<compile_context>
chip_gen: v7x
topology: tpu7x:2x2x1
jax: 0.10.0
libtpu: 0.0.40
codegen_flags: <defaults>
</compile_context>

<pallas_src>
import functools

import jax
import jax.numpy as jnp
from jax.experimental import pallas as pl
from jax.experimental.pallas import tpu as pltpu

INPUT_SIZE = 2
HIDDEN_SIZE = 20
OUTPUT_SIZE = 4


def smallnet_kernel(x_ref, w1_ref, b1_ref, w2_ref, b2_ref, o_ref, *, approx_sigmoid):
    # Shapes (batch = lane axis):
    #   x_ref : (INPUT_SIZE,  TB)
    #   w1_ref: (HIDDEN_SIZE, INPUT_SIZE)   -- PyTorch (out, in) layout
    #   b1_ref: (HIDDEN_SIZE, 1)
    #   w2_ref: (OUTPUT_SIZE, HIDDEN_SIZE)
    #   b2_ref: (OUTPUT_SIZE, 1)
    #   o_ref : (OUTPUT_SIZE, TB)
    x_t = x_ref[...]
    w1 = w1_ref[...]

    # fc1 on the VPU: K=2 contraction as two broadcast FMAs.  An MXU push/pop
    # for a 2-deep contraction is pure latency at ~0.1% utilization.
    h = b1_ref[...]                                   # (HIDDEN, 1) broadcasts over lanes
    for k in range(INPUT_SIZE):                       # unrolled at trace time
        h = h + w1[:, k:k + 1] * x_t[k:k + 1, :]      # (HIDDEN,1)*(1,TB) -> (HIDDEN,TB)

    # Sigmoid.  Fast path keeps both the exp and the divide on the EUP slot
    # (vrcp), leaving VALU for fc1's FMAs; exact path kept for tight checks.
    if approx_sigmoid:
        h = pl.reciprocal(1.0 + jnp.exp(-h), approx=True)
    else:
        h = jax.nn.sigmoid(h)

    # fc2 on the MXU: (OUTPUT, HIDDEN) @ (HIDDEN, TB), lane-dense along TB.
    y = jnp.dot(w2_ref[...], h, preferred_element_type=jnp.float32)
    o_ref[...] = (y + b2_ref[...]).astype(o_ref.dtype)


def _vmem_capacity_bytes():
    """Per-generation VMEM query (v5e/v6e 128 MiB, v7x 64 MiB per TC)."""
    try:
        return int(pltpu.get_tpu_info().vmem_capacity_bytes)
    except Exception:
        return 64 << 20  # conservative fallback: v7x per-TensorCore VMEM


def smallnet_forward_batch_last(x_t, w1, b1, w2, b2, *, block_b=32768,
                                approx_sigmoid=True, core_parallel=False):
    """Fast path: x_t (INPUT_SIZE, B) f32 -> (OUTPUT_SIZE, B) f32, no layout copies.

    core_parallel=True uses pltpu.CORE_PARALLEL on the batch grid axis to shard
    batch tiles across v7x's two TensorCores (leave False on v5e/v6e).
    """
    assert x_t.shape[0] == INPUT_SIZE
    B = x_t.shape[1]

    # ~512 B of VMEM per batch element (double-buffered sublane-padded x/out
    # tiles + the (20, tb) f32 activation slab + sigmoid temporaries), so cap
    # the tile against half the physical VMEM of this generation and raise the
    # scoped limit accordingly (v5e defaults to only 16 MiB).
    vmem_cap = _vmem_capacity_bytes()
    vmem_limit = max(32 << 20, vmem_cap // 2)
    tb_cap = max(128, (vmem_limit // 512) // 128 * 128)   # lane-dim multiple of 128
    tile = min(block_b, tb_cap)
    tb = B if B <= tile else tile
    grid = (pl.cdiv(B, tb),)

    flops = 2 * B * (INPUT_SIZE * HIDDEN_SIZE + HIDDEN_SIZE * OUTPUT_SIZE)
    transcendentals = B * HIDDEN_SIZE * (2 if approx_sigmoid else 1)
    bytes_accessed = 4 * (B * (INPUT_SIZE + OUTPUT_SIZE)
                          + HIDDEN_SIZE * (INPUT_SIZE + 1)
                          + OUTPUT_SIZE * (HIDDEN_SIZE + 1))

    kernel = functools.partial(smallnet_kernel, approx_sigmoid=approx_sigmoid)
    dim_sem = (pltpu.CORE_PARALLEL,) if core_parallel else ("parallel",)

    return pl.pallas_call(
        kernel,
        out_shape=jax.ShapeDtypeStruct((OUTPUT_SIZE, B), jnp.float32),
        grid=grid,
        in_specs=[
            pl.BlockSpec((INPUT_SIZE, tb), lambda i: (0, i)),            # x: streamed, lane-dense
            pl.BlockSpec((HIDDEN_SIZE, INPUT_SIZE), lambda i: (0, 0)),   # w1: resident
            pl.BlockSpec((HIDDEN_SIZE, 1), lambda i: (0, 0)),            # b1: resident
            pl.BlockSpec((OUTPUT_SIZE, HIDDEN_SIZE), lambda i: (0, 0)),  # w2: resident
            pl.BlockSpec((OUTPUT_SIZE, 1), lambda i: (0, 0)),            # b2: resident
        ],
        out_specs=pl.BlockSpec((OUTPUT_SIZE, tb), lambda i: (0, i)),     # lane-dense output
        compiler_params=pltpu.CompilerParams(
            dimension_semantics=dim_sem,
            vmem_limit_bytes=vmem_limit,
        ),
        cost_estimate=pl.CostEstimate(flops=flops,
                                      transcendentals=transcendentals,
                                      bytes_accessed=bytes_accessed),
    )(x_t, w1, b1, w2, b2)


def smallnet_forward(x, w1, b1, w2, b2, **kw):
    """PyTorch-compatible contract: x (B, INPUT_SIZE) -> (B, OUTPUT_SIZE).

    The x.T / out.T here are separate XLA copy ops (~3x the kernel's 24 B/elem
    HBM floor at large B).  Performance-critical callers should keep activations
    batch-last end-to-end and call smallnet_forward_batch_last directly.
    """
    return smallnet_forward_batch_last(x.T, w1, b1, w2, b2, **kw).T


def init_params(key):
    """Deterministic init mimicking nn.Linear's U(-1/sqrt(fan_in), 1/sqrt(fan_in)).

    Layouts: w1 (HIDDEN, INPUT), w2 (OUTPUT, HIDDEN)  -- PyTorch (out, in);
             b1 (HIDDEN, 1),     b2 (OUTPUT, 1)       -- column biases.
    """
    k1, k2, k3, k4 = jax.random.split(key, 4)
    bound1 = 1.0 / jnp.sqrt(INPUT_SIZE)
    bound2 = 1.0 / jnp.sqrt(HIDDEN_SIZE)
    w1 = jax.random.uniform(k1, (HIDDEN_SIZE, INPUT_SIZE), jnp.float32, -bound1, bound1)
    b1 = jax.random.uniform(k2, (HIDDEN_SIZE, 1), jnp.float32, -bound1, bound1)
    w2 = jax.random.uniform(k3, (OUTPUT_SIZE, HIDDEN_SIZE), jnp.float32, -bound2, bound2)
    b2 = jax.random.uniform(k4, (OUTPUT_SIZE, 1), jnp.float32, -bound2, bound2)
    return w1, b1, w2, b2


def reference_forward(x, w1, b1, w2, b2):
    h = jax.nn.sigmoid(x @ w1.T + b1.T)
    return h @ w2.T + b2.T


if __name__ == "__main__":
    key = jax.random.PRNGKey(0)
    kx_small, kx_big, kp = jax.random.split(key, 3)
    w1, b1, w2, b2 = init_params(kp)

    # 1) Small batch, exact sigmoid, batch-first compat path: tight math check.
    batch_small = 8
    x_small = jax.random.normal(kx_small, (batch_small, INPUT_SIZE), jnp.float32)
    out_small = jax.block_until_ready(
        smallnet_forward(x_small, w1, b1, w2, b2, approx_sigmoid=False))
    ref_small = reference_forward(x_small, w1, b1, w2, b2)
    assert out_small.shape == (batch_small, OUTPUT_SIZE)
    assert jnp.allclose(out_small, ref_small, atol=5e-5, rtol=5e-5)

    # 2) Larger batch, batch-last fast path (no layout copies), EUP sigmoid,
    #    small block_b to exercise the multi-step streamed grid.
    batch_big = 4096
    x_big = jax.random.normal(kx_big, (batch_big, INPUT_SIZE), jnp.float32)
    out_big_t = jax.block_until_ready(
        smallnet_forward_batch_last(x_big.T, w1, b1, w2, b2,
                                    block_b=1024, approx_sigmoid=True))
    ref_big = reference_forward(x_big, w1, b1, w2, b2)
    assert out_big_t.shape == (OUTPUT_SIZE, batch_big)
    assert jnp.allclose(out_big_t.T, ref_big, atol=5e-3, rtol=5e-3)

    print("KERNEL_OK")
</pallas_src>

<mosaic_0001>
module attributes {stable_mosaic.version = 11 : i64} {
  func.func @smallnet_kernel(%arg0: i32, %arg1: memref<2x8xf32, #tpu.memory_space<vmem>>, %arg2: memref<20x2xf32, #tpu.memory_space<vmem>>, %arg3: memref<20x1xf32, #tpu.memory_space<vmem>>, %arg4: memref<4x20xf32, #tpu.memory_space<vmem>>, %arg5: memref<4x1xf32, #tpu.memory_space<vmem>>, %arg6: memref<4x8xf32, #tpu.memory_space<vmem>>) attributes {dimension_semantics = [#tpu.dimension_semantics<parallel>], iteration_bounds = array<i64: 1>, scalar_prefetch = 0 : i64, scratch_operands = 0 : i64, tpu.core_type = #tpu.core_type<tc>, window_params = [{transform_indices = @transform_0, window_bounds = array<i64: 2, 8>}, {pipeline_mode = #tpu.pipeline_mode<synchronous>, transform_indices = @transform_1, window_bounds = array<i64: 20, 2>}, {pipeline_mode = #tpu.pipeline_mode<synchronous>, transform_indices = @transform_2, window_bounds = array<i64: 20, 1>}, {pipeline_mode = #tpu.pipeline_mode<synchronous>, transform_indices = @transform_3, window_bounds = array<i64: 4, 20>}, {pipeline_mode = #tpu.pipeline_mode<synchronous>, transform_indices = @transform_4, window_bounds = array<i64: 4, 1>}, {transform_indices = @transform_5, window_bounds = array<i64: 4, 8>}]} {
    %c0 = arith.constant 0 : index
    %c0_0 = arith.constant 0 : index
    %0 = vector.load %arg1[%c0, %c0_0] : memref<2x8xf32, #tpu.memory_space<vmem>>, vector<2x8xf32>
    %c0_1 = arith.constant 0 : index
    %c0_2 = arith.constant 0 : index
    %1 = vector.load %arg2[%c0_1, %c0_2] : memref<20x2xf32, #tpu.memory_space<vmem>>, vector<20x2xf32>
    %c0_3 = arith.constant 0 : index
    %c0_4 = arith.constant 0 : index
    %2 = vector.load %arg3[%c0_3, %c0_4] : memref<20x1xf32, #tpu.memory_space<vmem>>, vector<20x1xf32>
    %3 = vector.extract_strided_slice %1 {offsets = [0, 0], sizes = [20, 1], strides = [1, 1]} : vector<20x2xf32> to vector<20x1xf32>
    %4 = vector.extract_strided_slice %0 {offsets = [0, 0], sizes = [1, 8], strides = [1, 1]} : vector<2x8xf32> to vector<1x8xf32>
    %5 = vector.broadcast %3 : vector<20x1xf32> to vector<20x8xf32>
    %6 = vector.broadcast %4 : vector<1x8xf32> to vector<20x8xf32>
    %7 = arith.mulf %5, %6 : vector<20x8xf32>
    %8 = vector.broadcast %2 : vector<20x1xf32> to vector<20x8xf32>
    %9 = arith.addf %8, %7 : vector<20x8xf32>
    %10 = vector.extract_strided_slice %1 {offsets = [0, 1], sizes = [20, 1], strides = [1, 1]} : vector<20x2xf32> to vector<20x1xf32>
    %11 = vector.extract_strided_slice %0 {offsets = [1, 0], sizes = [1, 8], strides = [1, 1]} : vector<2x8xf32> to vector<1x8xf32>
    %12 = vector.broadcast %10 : vector<20x1xf32> to vector<20x8xf32>
    %13 = vector.broadcast %11 : vector<1x8xf32> to vector<20x8xf32>
    %14 = arith.mulf %12, %13 : vector<20x8xf32>
    %15 = arith.addf %9, %14 : vector<20x8xf32>
    %16 = arith.negf %15 : vector<20x8xf32>
    %17 = math.exp %16 : vector<20x8xf32>
    %cst = arith.constant 1.000000e+00 : f32
    %18 = vector.broadcast %cst : f32 to vector<20x8xf32>
    %19 = arith.addf %18, %17 : vector<20x8xf32>
    %20 = arith.divf %18, %19 : vector<20x8xf32>
    %c0_5 = arith.constant 0 : index
    %c0_6 = arith.constant 0 : index
    %21 = vector.load %arg4[%c0_5, %c0_6] : memref<4x20xf32, #tpu.memory_space<vmem>>, vector<4x20xf32>
    %cst_7 = arith.constant dense<0.000000e+00> : vector<4x8xf32>
    %22 = tpu.matmul %21, %20, %cst_7 {dimension_numbers = #tpu.dot_dimension_numbers<[1], [0], [0], [1], [0, 0, 1, 1], [], []>} : vector<4x20xf32>, vector<20x8xf32>, vector<4x8xf32> -> vector<4x8xf32>
    %c0_8 = arith.constant 0 : index
    %c0_9 = arith.constant 0 : index
    %23 = vector.load %arg5[%c0_8, %c0_9] : memref<4x1xf32, #tpu.memory_space<vmem>>, vector<4x1xf32>
    %24 = vector.broadcast %23 : vector<4x1xf32> to vector<4x8xf32>
    %25 = arith.addf %22, %24 : vector<4x8xf32>
    %c0_10 = arith.constant 0 : index
    %c0_11 = arith.constant 0 : index
    %26 = vector.load %arg6[%c0_10, %c0_11] : memref<4x8xf32, #tpu.memory_space<vmem>>, vector<4x8xf32>
    tpu.vector_store %arg6[%c0_10, %c0_11], %25 {strides = array<i32>} : memref<4x8xf32, #tpu.memory_space<vmem>>, vector<4x8xf32>,
    return
  }
  func.func @transform_0(%arg0: i32) -> (i32, i32) {
    %c0_i32 = arith.constant 0 : i32
    %c0_i32_0 = arith.constant 0 : i32
    return %c0_i32, %arg0 : i32, i32
  }
  func.func @transform_1(%arg0: i32) -> (i32, i32) {
    %c0_i32 = arith.constant 0 : i32
    %c0_i32_0 = arith.constant 0 : i32
    %c0_i32_1 = arith.constant 0 : i32
    return %c0_i32, %c0_i32_0 : i32, i32
  }
  func.func @transform_2(%arg0: i32) -> (i32, i32) {
    %c0_i32 = arith.constant 0 : i32
    %c0_i32_0 = arith.constant 0 : i32
    %c0_i32_1 = arith.constant 0 : i32
    return %c0_i32, %c0_i32_0 : i32, i32
  }
  func.func @transform_3(%arg0: i32) -> (i32, i32) {
    %c0_i32 = arith.constant 0 : i32
    %c0_i32_0 = arith.constant 0 : i32
    %c0_i32_1 = arith.constant 0 : i32
    return %c0_i32, %c0_i32_0 : i32, i32
  }
  func.func @transform_4(%arg0: i32) -> (i32, i32) {
    %c0_i32 = arith.constant 0 : i32
    %c0_i32_0 = arith.constant 0 : i32
    %c0_i32_1 = arith.constant 0 : i32
    return %c0_i32, %c0_i32_0 : i32, i32
  }
  func.func @transform_5(%arg0: i32) -> (i32, i32) {
    %c0_i32 = arith.constant 0 : i32
    %c0_i32_0 = arith.constant 0 : i32
    return %c0_i32, %arg0 : i32, i32
  }
}

</mosaic_0001>

<llo_original>
// kernel: tpu_custom_call.1
$region0: #{tpu_custom_call.1}
  #allocation0 [shape = 'u32[]', space=smem, size = 0x4, offset = 0x4, fixed_abs, tag = 'smem constant byte address 0x4 - core index']
  #allocation1 [shape = 'u32[144,128]{1,0:T(1,128)}', space=vmem, size = 0x12000, scoped, tag = 'internal scratch']
  %s0 = inlined_call_operand.vmem [shape: f32[2,8], index: 0, kind: input, shape index: {}]
  %s1 = inlined_call_operand.vmem [shape: f32[20,2], index: 1, kind: input, shape index: {}]
  %s2 = inlined_call_operand.vmem [shape: f32[20,1], index: 2, kind: input, shape index: {}]
  %s3 = inlined_call_operand.vmem [shape: f32[4,20], index: 3, kind: input, shape index: {}]
  %s4 = inlined_call_operand.vmem [shape: f32[4,1], index: 4, kind: input, shape index: {}]
  %s5 = inlined_call_operand.hbm [shape: f32[4,8], index: 5, kind: output, shape index: {}]
  %s6 = sld [smem:[#allocation0]]
  $region30: #{tpu_custom_call.1} parent=0
    _
  %s8 = ssub.s32 1, %s6
  %s9 = scalar_select 0, %s8, %s6
  $region1: #{tpu_custom_call.1} parent=0
    #allocation2 [shape = 'u8[2048]{0}', space=vmem, size = 0x800, scoped, tag = 'output window, operand 0, single buffered']
    #allocation3 [shape = 's32[1]{0}', space=sflag, size = 0x4, scoped, tag = 'scoped memory for tpu_custom_call.1']
    %10 = vsyncpa [#allocation3], 0
    // Predicated region
    $region2: #{tpu_custom_call.1} parent=1 // pred_check
      _
    $region3: #{tpu_custom_call.1} parent=1 // pred_check_branch
      %12 = sbr.rel (0) target = $region5
    $region4: #{tpu_custom_call.1} parent=1 // pred_region
      _
    $region5: #{tpu_custom_call.1} parent=1 // pred_fallthru
      _
    // Predicated region
    $region6: #{tpu_custom_call.1} parent=1 // pred_check
      _
    $region7: #{tpu_custom_call.1} parent=1 // pred_check_branch
      %14 = sbr.rel (0) target = $region9
    $region8: #{tpu_custom_call.1} parent=1 // pred_region
      _
    $region9: #{tpu_custom_call.1} parent=1 // pred_fallthru
      _
    // Predicated region
    $region10: #{tpu_custom_call.1} parent=1 // pred_check
      _
    $region11: #{tpu_custom_call.1} parent=1 // pred_check_branch
      %16 = sbr.rel (0) target = $region13
    $region12: #{tpu_custom_call.1} parent=1 // pred_region
      _
    $region13: #{tpu_custom_call.1} parent=1 // pred_fallthru
      _
    // Predicated region
    $region14: #{tpu_custom_call.1} parent=1 // pred_check
      _
    $region15: #{tpu_custom_call.1} parent=1 // pred_check_branch
      %18 = sbr.rel (0) target = $region17
    $region16: #{tpu_custom_call.1} parent=1 // pred_region
      _
    $region17: #{tpu_custom_call.1} parent=1 // pred_fallthru
      _
    // Predicated region
    $region18: #{tpu_custom_call.1} parent=1 // pred_check
      _
    $region19: #{tpu_custom_call.1} parent=1 // pred_check_branch
      %20 = sbr.rel (0) target = $region21
    $region20: #{tpu_custom_call.1} parent=1 // pred_region
      _
    $region21: #{tpu_custom_call.1} parent=1 // pred_fallthru
      _
    %v21 = vld [vmem:[%s0] sm:$0x3]
    %v22 = vld [vmem:[%s1] sm:$0xff]
    %v23 = vld [vmem:[%s1 + $0x8] sm:$0xff]
    %v24 = vld [vmem:[%s1 + $0x10] sm:$0xf]
    %v25 = vld [vmem:[%s2] sm:$0xff]
    %v26 = vld [vmem:[%s2 + $0x8] sm:$0xff]
    %v27 = vld [vmem:[%s2 + $0x10] sm:$0xf]
    %29 = vset.pattern.permute.xlu0 0
    %30 = vperm.xlu0 %29, %v22
    %v31 = vpop.permute.xlu0 %30
    %34 = vset.pattern.permute.xlu0 0
    %35 = vperm.xlu0 %34, %v23
    %v36 = vpop.permute.xlu0 %35
    %39 = vset.pattern.permute.xlu0 0
    %40 = vperm.xlu0 %39, %v24
    %v41 = vpop.permute.xlu0 %40
    %v43 = vlaneseq
    %v44 = vshrl.u32 %v43, 7
    %v45 = vsub.s32 0, %v44
    %v46 = vrot.slane %v21, %v45
    %v47 = vmul.f32 %v31, %v46
    %v48 = vmul.f32 %v36, %v46
    %v49 = vmul.f32 %v41, %v46
    %51 = vset.pattern.permute.xlu0 0
    %52 = vperm.xlu0 %51, %v25
    %v53 = vpop.permute.xlu0 %52
    %56 = vset.pattern.permute.xlu0 0
    %57 = vperm.xlu0 %56, %v26
    %v58 = vpop.permute.xlu0 %57
    %61 = vset.pattern.permute.xlu0 0
    %62 = vperm.xlu0 %61, %v27
    %v63 = vpop.permute.xlu0 %62
    %v65 = vadd.f32 %v53, %v47
    %v66 = vadd.f32 %v58, %v48
    %v67 = vadd.f32 %v63, %v49
    %68 = vset.pattern.permute.xlu0 1
    %69 = vperm.xlu0 %68, %v22
    %v70 = vpop.permute.xlu0 %69
    %72 = vset.pattern.permute.xlu0 1
    %73 = vperm.xlu0 %72, %v23
    %v74 = vpop.permute.xlu0 %73
    %76 = vset.pattern.permute.xlu0 1
    %77 = vperm.xlu0 %76, %v24
    %v78 = vpop.permute.xlu0 %77
    %v80 = vlaneseq
    %v81 = vshrl.u32 %v80, 7
    %v82 = vsub.s32 1, %v81
    %v83 = vrot.slane %v21, %v82
    %v84 = vmul.f32 %v70, %v83
    %v85 = vmul.f32 %v74, %v83
    %v86 = vmul.f32 %v78, %v83
    %v87 = vadd.f32 %v65, %v84
    %v88 = vadd.f32 %v66, %v85
    %v89 = vadd.f32 %v67, %v86
    %v90 = vxor.u32 %v87, 2147483648
    %v91 = vxor.u32 %v88, 2147483648
    %v92 = vxor.u32 %v89, 2147483648
    %v93 = vmul.f32 %v90, 1.442695
    %v94 = vpow.pop %v93
    %v95 = vmul.f32 %v91, 1.442695
    %v96 = vpow.pop %v95
    %v97 = vmul.f32 %v92, 1.442695
    %v98 = vpow.pop %v97
    %v99 = vadd.f32 %v94, 1.0
    %v100 = vadd.f32 %v96, 1.0
    %v101 = vadd.f32 %v98, 1.0
    %v102 = vrcp.pop %v99
    %v103 = vmul.f32 1.0, %v102
    %v104 = vrcp.pop %v100
    %v105 = vmul.f32 1.0, %v104
    %v106 = vrcp.pop %v101
    %v107 = vmul.f32 1.0, %v106
    %v108 = vld [vmem:[%s3] sm:$0xf]
    %v109 = vld [vmem:[%s4] sm:$0xf]
    %111 = vset.pattern.permute.xlu0 0
    %112 = vperm.xlu0 %111, %v109
    %v113 = vpop.permute.xlu0 %112
    %vm115 = vcmask 162816
    %v117 = vsel %vm115, %v108, 0
    %vm119 = vcmask 1043456
    %v121 = vsel %vm119, %v107, 0
    %123 = vmatprep.subr.mxu0 0.0
    %124 = vmatpush1.msra.mxu0 %v103
    %125 = vmatprep.subr.mxu0 0.0
    %126 = vmatpush1.msra.mxu0 %v105
    %127 = vmatprep.subr.mxu0 0.0
    %128 = vmatpush1.msra.mxu0 %v121
    %129 = vmatprep.subr.mxu0 0.0
    %130 = vmatpush1.msra.mxu0 0.0
    %131 = vmatprep.subr.mxu0 0.0
    %132 = vmatpush1.msra.mxu0 0.0
    %133 = vmatprep.subr.mxu0 0.0
    %134 = vmatpush1.msra.mxu0 0.0
    %135 = vmatprep.subr.mxu0 0.0
    %136 = vmatpush1.msra.mxu0 0.0
    %137 = vmatprep.subr.mxu0 0.0
    %138 = vmatpush1.msra.mxu0 0.0
    %139 = vmatprep.subr.mxu0 0.0
    %140 = vmatpush1.msra.mxu0 0.0
    %141 = vmatprep.subr.mxu0 0.0
    %142 = vmatpush1.msra.mxu0 0.0
    %143 = vmatprep.subr.mxu0 0.0
    %144 = vmatpush1.msra.mxu0 0.0
    %145 = vmatprep.subr.mxu0 0.0
    %146 = vmatpush1.msra.mxu0 0.0
    %147 = vmatprep.subr.mxu0 0.0
    %148 = vmatpush1.msra.mxu0 0.0
    %149 = vmatprep.subr.mxu0 0.0
    %150 = vmatpush1.msra.mxu0 0.0
    %151 = vmatprep.subr.mxu0 0.0
    %152 = vmatpush1.msra.mxu0 0.0
    %153 = vmatprep.subr.mxu0 0.0
    %154 = vmatpush1.msra.mxu0 0.0
    %155 = vmatprep.subr.mxu0 0.0
    %156 = vmatpush1.msra.mxu0 0.0
    %157 = vmatprep.subr.mxu0 0.0
    %158 = vmatpush1.msra.mxu0 0.0
    %159 = vmatprep.subr.mxu0 0.0
    %160 = vmatpush1.msra.mxu0 0.0
    %161 = vmatprep.subr.mxu0 0.0
    %162 = vmatpush1.msra.mxu0 0.0
    %163 = vmatprep.subr.mxu0 0.0
    %164 = vmatpush1.msra.mxu0 0.0
    %165 = vmatprep.subr.mxu0 0.0
    %166 = vmatpush1.msra.mxu0 0.0
    %167 = vmatprep.subr.mxu0 0.0
    %168 = vmatpush1.msra.mxu0 0.0
    %169 = vmatprep.subr.mxu0 0.0
    %170 = vmatpush1.msra.mxu0 0.0
    %171 = vmatprep.subr.mxu0 0.0
    %172 = vmatpush1.msra.mxu0 0.0
    %173 = vmatprep.subr.mxu0 0.0
    %174 = vmatpush1.msra.mxu0 0.0
    %175 = vmatprep.subr.mxu0 0.0
    %176 = vmatpush1.msra.mxu0 0.0
    %177 = vmatprep.subr.mxu0 0.0
    %178 = vmatpush1.msra.mxu0 0.0
    %179 = vmatprep.subr.mxu0 0.0
    %180 = vmatpush1.msra.mxu0 0.0
    %181 = vmatprep.subr.mxu0 0.0
    %182 = vmatpush1.msra.mxu0 0.0
    %183 = vmatprep.subr.mxu0 0.0
    %184 = vmatpush1.msra.mxu0 0.0
    %185 = vmatprep.subr.mxu0 0.0
    %186 = vmatpush1.msra.mxu0 0.0
    %187 = vmatprep.mubr.f32.mxu0 0.0
    %188 = vmatmul.mubr.f32.gmra.mrb[0].mxu0 %v117
    %v189 = vpop.f32.mrb[0].mxu0
    %v190 = vadd.f32 %v113, %v189
    %v191 = vpop.f32.mrb[0].mxu0
    %192 = vdwg.mxu0
    %vm193 = vcmask 60416
    %194 = vst.msk [vmem:[#allocation2] sm:$0xf] %vm193, %v190
    // Predicated region
    $region22: #{tpu_custom_call.1} parent=1 // pred_check
      _
    $region23: #{tpu_custom_call.1} parent=1 // pred_check_branch
      %196 = sbr.rel (0) target = $region25
    $region24: #{tpu_custom_call.1} parent=1 // pred_region
      %s198 = ssub.s32 64, 64
      %199 = vsyncadd [#allocation3], %s198
      %s201 = sshll.u32 [#allocation2], 4
      %s202 = int_to_ptr.vmem [resolvable:$true] %s201
      %204 = dma.vmem_to_hbm [thread:$0]  %s202, 64, %s5, [#allocation3]
    $region25: #{tpu_custom_call.1} parent=1 // pred_fallthru
      _
    // Predicated region
    $region26: #{tpu_custom_call.1} parent=1 // pred_check
      _
    $region27: #{tpu_custom_call.1} parent=1 // pred_check_branch
      %206 = sbr.rel (0) target = $region29
    $region28: #{tpu_custom_call.1} parent=1 // pred_region
      %207 = dma.done [#allocation3], 64
    $region29: #{tpu_custom_call.1} parent=1 // pred_fallthru
      _
    %208 = vsyncpa [#allocation3], 1

</llo_original>
